<compile_context>
chip_gen: v7x
topology: tpu7x:2x2x1
jax: 0.10.0
libtpu: 0.0.40
codegen_flags: <defaults>
</compile_context>

<pallas_src>
import jax
import jax.numpy as jnp
from jax.experimental import pallas as pl
from jax.experimental.pallas import tpu as pltpu


def _tuplenet_kernel(xT_ref, w1T_ref, b1_ref, w2_ref, b2_ref, o_ref):
    # xT: (D, T) batch-on-lanes | w1T: (H, D) | b1: (H, 1) | w2: (H, 1)
    # b2: (1,) scalar in SMEM   | o: (1, T) lane-dense scores
    h = jnp.dot(w1T_ref[...], xT_ref[...],
                preferred_element_type=jnp.float32)          # MXU: (H, T)
    h = jnp.maximum(h + b1_ref[...], 0.0)                    # VPU: bias + ReLU
    # Layer 2 as VPU multiply + sublane reduction (avoids a degenerate N=1 MXU op).
    s = jnp.sum(h * w2_ref[...], axis=0, keepdims=True)      # (1, T)
    o_ref[...] = (s + b2_ref[0]).astype(o_ref.dtype)


def _pick_tile(n, target=512):
    """Largest lane-tile <= target that divides n (multiple of 128 when tiling)."""
    if n <= target or n % 128 != 0:
        return n
    t = (min(target, n) // 128) * 128
    while n % t != 0:
        t -= 128
    return t


def _embedding_net_scores(xT, w1T, b1_col, w2_col, b2_scalar, *, tile):
    D, N = xT.shape
    H = w1T.shape[0]
    return pl.pallas_call(
        _tuplenet_kernel,
        out_shape=jax.ShapeDtypeStruct((1, N), jnp.float32),
        grid=(N // tile,),
        in_specs=[
            pl.BlockSpec((D, tile), lambda j: (0, j)),            # batch tile (lanes)
            pl.BlockSpec((H, D), lambda j: (0, 0)),               # weights stay VMEM-resident
            pl.BlockSpec((H, 1), lambda j: (0, 0)),
            pl.BlockSpec((H, 1), lambda j: (0, 0)),
            pl.BlockSpec(memory_space=pltpu.MemorySpace.SMEM),    # b2 scalar
        ],
        out_specs=pl.BlockSpec((1, tile), lambda j: (0, j)),
        compiler_params=pltpu.CompilerParams(
            dimension_semantics=("parallel",)),
    )(xT, w1T, b1_col, w2_col, b2_scalar)


def tuple_net_forward(u_p_embedding, u_n_embedding, params, *, max_tile=512):
    """TupleNet.forward: shared embedding_net on both inputs, one kernel launch."""
    w1, b1, w2, b2 = params
    B, D = u_p_embedding.shape
    H = w1.shape[1]
    # Fuse positive + negative passes; transpose so the batch lies on lanes.
    x = jnp.concatenate([u_p_embedding, u_n_embedding], axis=0)   # (2B, D)
    xT = jnp.transpose(x)                                          # (D, 2B)
    tile = _pick_tile(2 * B, max_tile)
    scores = _embedding_net_scores(
        xT,
        jnp.transpose(w1),         # (H, D)
        jnp.reshape(b1, (H, 1)),   # (H, 1)
        jnp.reshape(w2, (H, 1)),   # (H, 1)
        jnp.reshape(b2, (1,)),     # SMEM scalar
        tile=tile,
    )                                                              # (1, 2B)
    scores = scores[0]
    p_score = jnp.reshape(scores[:B], (B, 1))
    n_score = jnp.reshape(scores[B:], (B, 1))
    return p_score, n_score


def init_params(key, embed_dim, hidden_dim):
    k1, k2 = jax.random.split(key)
    w1 = jax.random.normal(k1, (embed_dim, hidden_dim), jnp.float32) * 0.1
    b1 = jnp.zeros((1, hidden_dim), jnp.float32)
    w2 = jax.random.normal(k2, (hidden_dim, 1), jnp.float32) * 0.1
    b2 = jnp.zeros((1, 1), jnp.float32)
    return w1, b1, w2, b2


if __name__ == "__main__":
    B, D, H = 8, 32, 32   # small batch / embedding / hidden sizes

    key = jax.random.PRNGKey(0)
    k_p, k_n, k_w = jax.random.split(key, 3)
    u_p = jax.random.normal(k_p, (B, D), jnp.float32)
    u_n = jax.random.normal(k_n, (B, D), jnp.float32)
    params = init_params(k_w, D, H)

    p_score, n_score = jax.jit(tuple_net_forward)(u_p, u_n, params)
    jax.block_until_ready((p_score, n_score))

    # Pure-JAX reference check of the shared MLP.
    w1, b1, w2, b2 = params
    ref = lambda x: jnp.maximum(x @ w1 + b1, 0.0) @ w2 + b2
    assert jnp.allclose(p_score, ref(u_p), atol=1e-4)
    assert jnp.allclose(n_score, ref(u_n), atol=1e-4)
    assert p_score.shape == (B, 1) and n_score.shape == (B, 1)

    print("KERNEL_OK")
</pallas_src>

<mosaic_0001>
module attributes {stable_mosaic.version = 11 : i64} {
  func.func @_tuplenet_kernel(%arg0: i32, %arg1: memref<32x16xf32, #tpu.memory_space<vmem>>, %arg2: memref<32x32xf32, #tpu.memory_space<vmem>>, %arg3: memref<32x1xf32, #tpu.memory_space<vmem>>, %arg4: memref<32x1xf32, #tpu.memory_space<vmem>>, %arg5: memref<1xf32, #tpu.memory_space<smem>>, %arg6: memref<1x16xf32, #tpu.memory_space<vmem>>) attributes {dimension_semantics = [#tpu.dimension_semantics<parallel>], iteration_bounds = array<i64: 1>, scalar_prefetch = 0 : i64, scratch_operands = 0 : i64, tpu.core_type = #tpu.core_type<tc>, window_params = [{transform_indices = @transform_0, window_bounds = array<i64: 32, 16>}, {pipeline_mode = #tpu.pipeline_mode<synchronous>, transform_indices = @transform_1, window_bounds = array<i64: 32, 32>}, {pipeline_mode = #tpu.pipeline_mode<synchronous>, transform_indices = @transform_2, window_bounds = array<i64: 32, 1>}, {pipeline_mode = #tpu.pipeline_mode<synchronous>, transform_indices = @transform_3, window_bounds = array<i64: 32, 1>}, {transform_indices = @transform_4, window_bounds = array<i64: 1>}, {transform_indices = @transform_5, window_bounds = array<i64: 1, 16>}]} {
    %c0 = arith.constant 0 : index
    %c0_0 = arith.constant 0 : index
    %0 = vector.load %arg2[%c0, %c0_0] : memref<32x32xf32, #tpu.memory_space<vmem>>, vector<32x32xf32>
    %c0_1 = arith.constant 0 : index
    %c0_2 = arith.constant 0 : index
    %1 = vector.load %arg1[%c0_1, %c0_2] : memref<32x16xf32, #tpu.memory_space<vmem>>, vector<32x16xf32>
    %cst = arith.constant dense<0.000000e+00> : vector<32x16xf32>
    %2 = tpu.matmul %0, %1, %cst {dimension_numbers = #tpu.dot_dimension_numbers<[1], [0], [0], [1], [0, 0, 1, 1], [], []>} : vector<32x32xf32>, vector<32x16xf32>, vector<32x16xf32> -> vector<32x16xf32>
    %c0_3 = arith.constant 0 : index
    %c0_4 = arith.constant 0 : index
    %3 = vector.load %arg3[%c0_3, %c0_4] : memref<32x1xf32, #tpu.memory_space<vmem>>, vector<32x1xf32>
    %4 = vector.broadcast %3 : vector<32x1xf32> to vector<32x16xf32>
    %5 = arith.addf %2, %4 : vector<32x16xf32>
    %cst_5 = arith.constant 0.000000e+00 : f32
    %6 = vector.broadcast %cst_5 : f32 to vector<32x16xf32>
    %7 = arith.maximumf %5, %6 : vector<32x16xf32>
    %c0_6 = arith.constant 0 : index
    %c0_7 = arith.constant 0 : index
    %8 = vector.load %arg4[%c0_6, %c0_7] : memref<32x1xf32, #tpu.memory_space<vmem>>, vector<32x1xf32>
    %9 = vector.broadcast %8 : vector<32x1xf32> to vector<32x16xf32>
    %10 = arith.mulf %7, %9 : vector<32x16xf32>
    %cst_8 = arith.constant dense<0.000000e+00> : vector<16xf32>
    %11 = vector.multi_reduction <add>, %10, %cst_8 [0] : vector<32x16xf32> to vector<16xf32>
    %12 = vector.shape_cast %11 : vector<16xf32> to vector<1x16xf32>
    %c0_9 = arith.constant 0 : index
    %13 = memref.load %arg5[%c0_9] : memref<1xf32, #tpu.memory_space<smem>>
    %14 = vector.broadcast %13 : f32 to vector<1x16xf32>
    %15 = arith.addf %12, %14 : vector<1x16xf32>
    %c0_10 = arith.constant 0 : index
    %c0_11 = arith.constant 0 : index
    %16 = vector.load %arg6[%c0_10, %c0_11] : memref<1x16xf32, #tpu.memory_space<vmem>>, vector<1x16xf32>
    tpu.vector_store %arg6[%c0_10, %c0_11], %15 {strides = array<i32>} : memref<1x16xf32, #tpu.memory_space<vmem>>, vector<1x16xf32>,
    return
  }
  func.func @transform_0(%arg0: i32) -> (i32, i32) {
    %c0_i32 = arith.constant 0 : i32
    %c0_i32_0 = arith.constant 0 : i32
    return %c0_i32, %arg0 : i32, i32
  }
  func.func @transform_1(%arg0: i32) -> (i32, i32) {
    %c0_i32 = arith.constant 0 : i32
    %c0_i32_0 = arith.constant 0 : i32
    %c0_i32_1 = arith.constant 0 : i32
    return %c0_i32, %c0_i32_0 : i32, i32
  }
  func.func @transform_2(%arg0: i32) -> (i32, i32) {
    %c0_i32 = arith.constant 0 : i32
    %c0_i32_0 = arith.constant 0 : i32
    %c0_i32_1 = arith.constant 0 : i32
    return %c0_i32, %c0_i32_0 : i32, i32
  }
  func.func @transform_3(%arg0: i32) -> (i32, i32) {
    %c0_i32 = arith.constant 0 : i32
    %c0_i32_0 = arith.constant 0 : i32
    %c0_i32_1 = arith.constant 0 : i32
    return %c0_i32, %c0_i32_0 : i32, i32
  }
  func.func @transform_4(%arg0: i32) -> i32 {
    %c0_i32 = arith.constant 0 : i32
    %c0_i32_0 = arith.constant 0 : i32
    return %c0_i32 : i32
  }
  func.func @transform_5(%arg0: i32) -> (i32, i32) {
    %c0_i32 = arith.constant 0 : i32
    %c0_i32_0 = arith.constant 0 : i32
    return %c0_i32, %arg0 : i32, i32
  }
}

</mosaic_0001>

<llo_original>
// kernel: tuple_net_forward.1
$region0: #{tuple_net_forward.1}
  #allocation0 [shape = 'u32[]', space=smem, size = 0x4, offset = 0x4, fixed_abs, tag = 'smem constant byte address 0x4 - core index']
  #allocation1 [shape = 'u32[144,128]{1,0:T(1,128)}', space=vmem, size = 0x12000, scoped, tag = 'internal scratch']
  #allocation2 [shape = 'f32[1]{0:T(128)S(6)}', space=smem, size = 0x200, scoped, tag = 'scoped memory for tuple_net_forward.1']
  %s0 = inlined_call_operand.vmem [shape: f32[32,16], index: 0, kind: input, shape index: {}]
  %s1 = inlined_call_operand.vmem [shape: f32[32,32], index: 1, kind: input, shape index: {}]
  %s2 = inlined_call_operand.vmem [shape: f32[32,1], index: 2, kind: input, shape index: {}]
  %s3 = inlined_call_operand.vmem [shape: f32[32,1], index: 3, kind: input, shape index: {}]
  %s4 = inlined_call_operand.<no memory space> [shape: f32[1], index: 4, kind: input, shape index: {}]
  %s5 = inlined_call_operand.vmem [shape: f32[1,16], index: 5, kind: output, shape index: {}]
  %s6 = sld [smem:[#allocation0]]
  $region30: #{tuple_net_forward.1} parent=0
    _
  %s8 = ssub.s32 1, %s6
  %s9 = scalar_select 0, %s8, %s6
  %10 = sst [smem:[#allocation2]] %s4
  // Predicated region
  $region2: #{tuple_net_forward.1} parent=0 // pred_check
    _
  $region3: #{tuple_net_forward.1} parent=0 // pred_check_branch
    %12 = sbr.rel (0) target = $region5
  $region4: #{tuple_net_forward.1} parent=0 // pred_region
    _
  $region5: #{tuple_net_forward.1} parent=0 // pred_fallthru
    _
  // Predicated region
  $region6: #{tuple_net_forward.1} parent=0 // pred_check
    _
  $region7: #{tuple_net_forward.1} parent=0 // pred_check_branch
    %14 = sbr.rel (0) target = $region9
  $region8: #{tuple_net_forward.1} parent=0 // pred_region
    _
  $region9: #{tuple_net_forward.1} parent=0 // pred_fallthru
    _
  // Predicated region
  $region10: #{tuple_net_forward.1} parent=0 // pred_check
    _
  $region11: #{tuple_net_forward.1} parent=0 // pred_check_branch
    %16 = sbr.rel (0) target = $region13
  $region12: #{tuple_net_forward.1} parent=0 // pred_region
    _
  $region13: #{tuple_net_forward.1} parent=0 // pred_fallthru
    _
  // Predicated region
  $region14: #{tuple_net_forward.1} parent=0 // pred_check
    _
  $region15: #{tuple_net_forward.1} parent=0 // pred_check_branch
    %18 = sbr.rel (0) target = $region17
  $region16: #{tuple_net_forward.1} parent=0 // pred_region
    _
  $region17: #{tuple_net_forward.1} parent=0 // pred_fallthru
    _
  // Predicated region
  $region18: #{tuple_net_forward.1} parent=0 // pred_check
    _
  $region19: #{tuple_net_forward.1} parent=0 // pred_check_branch
    %20 = sbr.rel (0) target = $region21
  $region20: #{tuple_net_forward.1} parent=0 // pred_region
    _
  $region21: #{tuple_net_forward.1} parent=0 // pred_fallthru
    _
  %v21 = vld [vmem:[%s1] sm:$0xff]
  %v22 = vld [vmem:[%s1 + $0x8] sm:$0xff]
  %v23 = vld [vmem:[%s1 + $0x10] sm:$0xff]
  %v24 = vld [vmem:[%s1 + $0x18] sm:$0xff]
  %v25 = vld [vmem:[%s0] sm:$0xff]
  %v26 = vld [vmem:[%s0 + $0x8] sm:$0xff]
  %v27 = vld [vmem:[%s0 + $0x10] sm:$0xff]
  %v28 = vld [vmem:[%s0 + $0x18] sm:$0xff]
  %v29 = vld [vmem:[%s2] sm:$0xff]
  %v30 = vld [vmem:[%s2 + $0x8] sm:$0xff]
  %v31 = vld [vmem:[%s2 + $0x10] sm:$0xff]
  %v32 = vld [vmem:[%s2 + $0x18] sm:$0xff]
  %34 = vset.pattern.permute.xlu0 0
  %35 = vperm.xlu0 %34, %v29
  %v36 = vpop.permute.xlu0 %35
  %39 = vset.pattern.permute.xlu0 0
  %40 = vperm.xlu0 %39, %v30
  %v41 = vpop.permute.xlu0 %40
  %44 = vset.pattern.permute.xlu0 0
  %45 = vperm.xlu0 %44, %v31
  %v46 = vpop.permute.xlu0 %45
  %49 = vset.pattern.permute.xlu0 0
  %50 = vperm.xlu0 %49, %v32
  %v51 = vpop.permute.xlu0 %50
  %vm53 = vcmask 261120
  %v55 = vsel %vm53, %v21, 0
  %v58 = vsel %vm53, %v22, 0
  %v61 = vsel %vm53, %v23, 0
  %v64 = vsel %vm53, %v24, 0
  %66 = vmatprep.subr.mxu0 0.0
  %67 = vmatpush1.msra.mxu0 %v25
  %68 = vmatprep.subr.mxu0 0.0
  %69 = vmatpush1.msra.mxu0 %v26
  %70 = vmatprep.subr.mxu0 0.0
  %71 = vmatpush1.msra.mxu0 %v27
  %72 = vmatprep.subr.mxu0 0.0
  %73 = vmatpush1.msra.mxu0 %v28
  %74 = vmatprep.subr.mxu0 0.0
  %75 = vmatpush1.msra.mxu0 0.0
  %76 = vmatprep.subr.mxu0 0.0
  %77 = vmatpush1.msra.mxu0 0.0
  %78 = vmatprep.subr.mxu0 0.0
  %79 = vmatpush1.msra.mxu0 0.0
  %80 = vmatprep.subr.mxu0 0.0
  %81 = vmatpush1.msra.mxu0 0.0
  %82 = vmatprep.subr.mxu0 0.0
  %83 = vmatpush1.msra.mxu0 0.0
  %84 = vmatprep.subr.mxu0 0.0
  %85 = vmatpush1.msra.mxu0 0.0
  %86 = vmatprep.subr.mxu0 0.0
  %87 = vmatpush1.msra.mxu0 0.0
  %88 = vmatprep.subr.mxu0 0.0
  %89 = vmatpush1.msra.mxu0 0.0
  %90 = vmatprep.subr.mxu0 0.0
  %91 = vmatpush1.msra.mxu0 0.0
  %92 = vmatprep.subr.mxu0 0.0
  %93 = vmatpush1.msra.mxu0 0.0
  %94 = vmatprep.subr.mxu0 0.0
  %95 = vmatpush1.msra.mxu0 0.0
  %96 = vmatprep.subr.mxu0 0.0
  %97 = vmatpush1.msra.mxu0 0.0
  %98 = vmatprep.subr.mxu0 0.0
  %99 = vmatpush1.msra.mxu0 0.0
  %100 = vmatprep.subr.mxu0 0.0
  %101 = vmatpush1.msra.mxu0 0.0
  %102 = vmatprep.subr.mxu0 0.0
  %103 = vmatpush1.msra.mxu0 0.0
  %104 = vmatprep.subr.mxu0 0.0
  %105 = vmatpush1.msra.mxu0 0.0
  %106 = vmatprep.subr.mxu0 0.0
  %107 = vmatpush1.msra.mxu0 0.0
  %108 = vmatprep.subr.mxu0 0.0
  %109 = vmatpush1.msra.mxu0 0.0
  %110 = vmatprep.subr.mxu0 0.0
  %111 = vmatpush1.msra.mxu0 0.0
  %112 = vmatprep.subr.mxu0 0.0
  %113 = vmatpush1.msra.mxu0 0.0
  %114 = vmatprep.subr.mxu0 0.0
  %115 = vmatpush1.msra.mxu0 0.0
  %116 = vmatprep.subr.mxu0 0.0
  %117 = vmatpush1.msra.mxu0 0.0
  %118 = vmatprep.subr.mxu0 0.0
  %119 = vmatpush1.msra.mxu0 0.0
  %120 = vmatprep.subr.mxu0 0.0
  %121 = vmatpush1.msra.mxu0 0.0
  %122 = vmatprep.subr.mxu0 0.0
  %123 = vmatpush1.msra.mxu0 0.0
  %124 = vmatprep.subr.mxu0 0.0
  %125 = vmatpush1.msra.mxu0 0.0
  %126 = vmatprep.subr.mxu0 0.0
  %127 = vmatpush1.msra.mxu0 0.0
  %128 = vmatprep.subr.mxu0 0.0
  %129 = vmatpush1.msra.mxu0 0.0
  %130 = vmatprep.mubr.f32.mxu0 0.0
  %131 = vmatmul.mubr.f32.gmra.mrb[0].mxu0 %v55
  %v132 = vpop.f32.mrb[0].mxu0
  %v133 = vadd.f32 %v36, %v132
  %v134 = vpop.f32.mrb[0].mxu0
  %135 = vmatprep.mubr.f32.mxu0 0.0
  %136 = vmatmul.mubr.f32.gmra.mrb[0].mxu0 %v58
  %v137 = vpop.f32.mrb[0].mxu0
  %v138 = vadd.f32 %v41, %v137
  %v139 = vpop.f32.mrb[0].mxu0
  %140 = vmatprep.mubr.f32.mxu0 0.0
  %141 = vmatmul.mubr.f32.gmra.mrb[0].mxu0 %v61
  %v142 = vpop.f32.mrb[0].mxu0
  %v143 = vadd.f32 %v46, %v142
  %v144 = vpop.f32.mrb[0].mxu0
  %145 = vmatprep.mubr.f32.mxu0 0.0
  %146 = vmatmul.mubr.f32.gmra.mrb[0].mxu0 %v64
  %v147 = vpop.f32.mrb[0].mxu0
  %v148 = vadd.f32 %v51, %v147
  %v149 = vpop.f32.mrb[0].mxu0
  %150 = vdwg.mxu0
  %v151 = vmax.f32 %v133, 0.0
  %v152 = vmax.f32 %v138, 0.0
  %v153 = vmax.f32 %v143, 0.0
  %v154 = vmax.f32 %v148, 0.0
  %v155 = vld [vmem:[%s3] sm:$0xff]
  %v156 = vld [vmem:[%s3 + $0x8] sm:$0xff]
  %v157 = vld [vmem:[%s3 + $0x10] sm:$0xff]
  %v158 = vld [vmem:[%s3 + $0x18] sm:$0xff]
  %160 = vset.pattern.permute.xlu0 0
  %161 = vperm.xlu0 %160, %v155
  %v162 = vpop.permute.xlu0 %161
  %165 = vset.pattern.permute.xlu0 0
  %166 = vperm.xlu0 %165, %v156
  %v167 = vpop.permute.xlu0 %166
  %170 = vset.pattern.permute.xlu0 0
  %171 = vperm.xlu0 %170, %v157
  %v172 = vpop.permute.xlu0 %171
  %175 = vset.pattern.permute.xlu0 0
  %176 = vperm.xlu0 %175, %v158
  %v177 = vpop.permute.xlu0 %176
  %v179 = vmul.f32 %v151, %v162
  %v180 = vmul.f32 %v152, %v167
  %v181 = vmul.f32 %v153, %v172
  %v182 = vmul.f32 %v154, %v177
  %vm183 = vcmask 130048
  %v184 = vsel %vm183, %v179, 0.0
  %v185 = vsel %vm183, %v180, 0.0
  %v186 = vadd.f32 %v184, %v185
  %v187 = vsel %vm183, %v181, 0.0
  %v188 = vadd.f32 %v186, %v187
  %v189 = vsel %vm183, %v182, 0.0
  %v190 = vadd.f32 %v188, %v189
  %v191 = vrot.slane %v190, 4
  %v192 = vadd.f32 %v190, %v191
  %v193 = vrot.slane %v192, 2
  %v194 = vadd.f32 %v192, %v193
  %v195 = vrot.slane %v194, 1
  %v196 = vadd.f32 %v194, %v195
  %s197 = sld [smem:[#allocation2]]
  %v198 = vstv %s197
  %v199 = vadd.f32 %v196, %v198
  %vm200 = vcmask 122880
  %201 = vst.msk [vmem:[%s5] sm:$0x1] %vm200, %v199
  // Predicated region
  $region22: #{tuple_net_forward.1} parent=0 // pred_check
    _
  $region23: #{tuple_net_forward.1} parent=0 // pred_check_branch
    %203 = sbr.rel (0) target = $region25
  $region24: #{tuple_net_forward.1} parent=0 // pred_region
    _
  $region25: #{tuple_net_forward.1} parent=0 // pred_fallthru
    _
  // Predicated region
  $region26: #{tuple_net_forward.1} parent=0 // pred_check
    _
  $region27: #{tuple_net_forward.1} parent=0 // pred_check_branch
    %205 = sbr.rel (0) target = $region29
  $region28: #{tuple_net_forward.1} parent=0 // pred_region
    _
  $region29: #{tuple_net_forward.1} parent=0 // pred_fallthru
    _

</llo_original>
